<compile_context>
chip_gen: v7x
topology: tpu7x:2x2x1
jax: 0.10.0
libtpu: 0.0.40
codegen_flags: <defaults>
</compile_context>

<pallas_src>
import jax
import jax.numpy as jnp
from jax.experimental import pallas as pl
from jax.experimental.pallas import tpu as pltpu


def _round_up(n, m):
    return ((n + m - 1) // m) * m


def _mlp_softmax_kernel(xt_ref, w1_ref, b1_ref, w2_ref, b2_ref, w3_ref, b3_ref, ot_ref):
    """One batch-lane tile: [n_features, tb] -> [output_dim, tb], all in VMEM."""
    # Layer 1: bf16 x bf16 -> f32 on the MXU; N (lane) dim = batch tile.
    h1 = jnp.dot(w1_ref[...], xt_ref[...], preferred_element_type=jnp.float32)
    h1 = jnp.maximum(h1 + b1_ref[...], 0.0)

    # Layers 2/3 stay f32 (intermediates never touch HBM; keeps precision).
    h2 = jnp.dot(w2_ref[...], h1, preferred_element_type=jnp.float32)
    h2 = jnp.maximum(h2 + b2_ref[...], 0.0)

    logits = jnp.dot(w3_ref[...], h2, preferred_element_type=jnp.float32) + b3_ref[...]

    # Numerically stable softmax over the class axis (axis 0: a tiny sublane
    # reduce) with an exact divide so rows sum to 1 to f32 precision.
    m = jnp.max(logits, axis=0, keepdims=True)
    e = jnp.exp(logits - m)
    denom = jnp.sum(e, axis=0, keepdims=True)
    ot_ref[...] = (e / denom).astype(ot_ref.dtype)


def _forward_jnp(x2d, params):
    """Plain-JAX forward (exact PyTorch semantics, f32).  Small-batch fast
    path: one fused XLA GEMM chain beats a custom-call launch there."""
    w1, b1, w2, b2, w3, b3 = params
    h1 = jnp.maximum(x2d @ w1.T + b1, 0.0)
    h2 = jnp.maximum(h1 @ w2.T + b2, 0.0)
    return jax.nn.softmax(h2 @ w3.T + b3, axis=1)


def net_forward(x, params, *, max_block_cols=4096, min_pallas_batch=512,
                x_compute_dtype=jnp.bfloat16, vmem_budget_bytes=23 << 20):
    """Forward pass of `Net`.  x may be any shape whose trailing dims flatten
    to n_features; it is reshaped to [-1, n_features] like x.view(...)."""
    w1, b1, w2, b2, w3, b3 = params           # PyTorch layout: W [out, in], b [out]
    h1_dim, n_features = w1.shape
    h2_dim = w2.shape[0]
    output_dim = w3.shape[0]

    x2d = x.reshape(-1, n_features).astype(jnp.float32)
    batch = x2d.shape[0]

    # Tiny batches: custom-call launch + a single grid step is pure overhead.
    if batch < min_pallas_batch:
        return _forward_jnp(x2d, params)

    # --- choose batch-lane tile (VMEM-budgeted, lane/sublane-padding aware) --
    lane_align = 256                          # full MXU N width on v6e/v7x
    x_item = jnp.dtype(x_compute_dtype).itemsize
    x_subl = 8 * (4 // x_item)                # sublane multiple: 8 f32, 16 bf16
    per_col_bytes = (
        2 * _round_up(n_features, x_subl) * x_item         # x tile, double-buffered
        + 2 * _round_up(output_dim, 8) * 4                 # out tile, double-buffered
        + (_round_up(h1_dim, 8) + _round_up(h2_dim, 8)     # f32 intermediates
           + 2 * _round_up(output_dim, 8)) * 4
    )
    budget = vmem_budget_bytes - (1 << 20)    # headroom for resident weights/biases
    tb = max(lane_align, (budget // per_col_bytes) // lane_align * lane_align)
    tb = min(tb, max_block_cols)
    padded_min = _round_up(batch, lane_align)
    tb = min(tb, padded_min)
    if padded_min >= 2 * lane_align:          # >= 2 grid steps -> both v7x TCs busy
        tb = min(tb, _round_up(pl.cdiv(padded_min, 2), lane_align))
    padded = _round_up(batch, tb)

    # --- transposed / quantized operands -------------------------------------
    xt = x2d.astype(x_compute_dtype).T        # [n_features, batch], lane-dense
    if padded != batch:
        xt = jnp.pad(xt, ((0, 0), (0, padded - batch)))
    w1c = w1.astype(x_compute_dtype)
    b1c = b1.reshape(h1_dim, 1).astype(jnp.float32)
    w2c = w2.astype(jnp.float32)
    b2c = b2.reshape(h2_dim, 1).astype(jnp.float32)
    w3c = w3.astype(jnp.float32)
    b3c = b3.reshape(output_dim, 1).astype(jnp.float32)

    grid = (padded // tb,)

    flops = 2 * padded * (n_features * h1_dim + h1_dim * h2_dim + h2_dim * output_dim)
    bytes_accessed = (padded * n_features * x_item + 4 * padded * output_dim
                      + x_item * h1_dim * n_features
                      + 4 * (h1_dim + h2_dim * h1_dim + h2_dim
                             + output_dim * h2_dim + output_dim))
    cost = pl.CostEstimate(flops=flops, transcendentals=padded * output_dim,
                           bytes_accessed=bytes_accessed)

    const2d = lambda i: (0, 0)                # weights/biases stay VMEM-resident
    out_t = pl.pallas_call(
        _mlp_softmax_kernel,
        out_shape=jax.ShapeDtypeStruct((output_dim, padded), jnp.float32),
        grid=grid,
        in_specs=[
            pl.BlockSpec((n_features, tb), lambda i: (0, i)),
            pl.BlockSpec((h1_dim, n_features), const2d),
            pl.BlockSpec((h1_dim, 1), const2d),
            pl.BlockSpec((h2_dim, h1_dim), const2d),
            pl.BlockSpec((h2_dim, 1), const2d),
            pl.BlockSpec((output_dim, h2_dim), const2d),
            pl.BlockSpec((output_dim, 1), const2d),
        ],
        out_specs=pl.BlockSpec((output_dim, tb), lambda i: (0, i)),
        compiler_params=pltpu.CompilerParams(
            dimension_semantics=("parallel",)),
        cost_estimate=cost,
    )(xt, w1c, b1c, w2c, b2c, w3c, b3c)

    return out_t[:, :batch].T                 # back to [batch, output_dim]


def init_params(key, n_features, output_dim):
    """nn.Linear-style init (uniform +-1/sqrt(fan_in)); PyTorch layout W [out, in]."""
    hidden_sizes = [16, 64]
    dims = [n_features, hidden_sizes[0], hidden_sizes[1], output_dim]
    params = []
    keys = jax.random.split(key, 2 * (len(dims) - 1))
    for i in range(len(dims) - 1):
        fan_in, fan_out = dims[i], dims[i + 1]
        bound = 1.0 / (float(fan_in) ** 0.5)
        w = jax.random.uniform(keys[2 * i], (fan_out, fan_in),
                               minval=-bound, maxval=bound, dtype=jnp.float32)
        b = jax.random.uniform(keys[2 * i + 1], (fan_out,),
                               minval=-bound, maxval=bound, dtype=jnp.float32)
        params += [w, b]
    return tuple(params)


if __name__ == "__main__":
    n_features = 10
    output_dim = 3

    key = jax.random.PRNGKey(0)
    k_x, k_xs, k_p = jax.random.split(key, 3)
    params = init_params(k_p, n_features, output_dim)
    w1, b1, w2, b2, w3, b3 = params

    # --- Pallas path: 777 rows pads to 1024 -> tile 512, grid=(2,) -----------
    batch = 777
    x = jax.random.normal(k_x, (batch, n_features), dtype=jnp.float32)
    y = jax.block_until_ready(net_forward(x, params))
    assert y.shape == (batch, output_dim)

    # Reference with the same bf16 quantization of the first-layer operands
    # (the only place the kernel deviates from pure f32), plus a pure-f32 ref.
    xq = x.astype(jnp.bfloat16).astype(jnp.float32)
    w1q = w1.astype(jnp.bfloat16).astype(jnp.float32)
    h1 = jnp.maximum(xq @ w1q.T + b1, 0.0)
    h2 = jnp.maximum(h1 @ w2.T + b2, 0.0)
    ref_bf16 = jax.nn.softmax(h2 @ w3.T + b3, axis=1)
    ref_f32 = _forward_jnp(x.reshape(-1, n_features), params)

    assert jnp.allclose(jnp.sum(y, axis=1), 1.0, atol=1e-5)       # exact divide
    assert jnp.allclose(y, ref_bf16, atol=1e-4, rtol=1e-4)
    assert jnp.allclose(y, ref_f32, atol=2e-2)                    # bf16 layer-1 quant

    # --- small-batch fast path with a non-2D input (exercises view(-1, nf)) --
    xs = jax.random.normal(k_xs, (2, 3, n_features), dtype=jnp.float32)
    ys = jax.block_until_ready(net_forward(xs, params))
    refs = _forward_jnp(xs.reshape(-1, n_features), params)
    assert ys.shape == (6, output_dim)
    assert jnp.allclose(ys, refs, atol=1e-6)

    print("KERNEL_OK")
</pallas_src>

<mosaic_0001>
module attributes {stable_mosaic.version = 11 : i64} {
  func.func @_mlp_softmax_kernel(%arg0: i32, %arg1: memref<10x512xbf16, #tpu.memory_space<vmem>>, %arg2: memref<16x10xbf16, #tpu.memory_space<vmem>>, %arg3: memref<16x1xf32, #tpu.memory_space<vmem>>, %arg4: memref<64x16xf32, #tpu.memory_space<vmem>>, %arg5: memref<64x1xf32, #tpu.memory_space<vmem>>, %arg6: memref<3x64xf32, #tpu.memory_space<vmem>>, %arg7: memref<3x1xf32, #tpu.memory_space<vmem>>, %arg8: memref<3x512xf32, #tpu.memory_space<vmem>>) attributes {dimension_semantics = [#tpu.dimension_semantics<parallel>], iteration_bounds = array<i64: 2>, scalar_prefetch = 0 : i64, scratch_operands = 0 : i64, tpu.core_type = #tpu.core_type<tc>, window_params = [{transform_indices = @transform_0, window_bounds = array<i64: 10, 512>}, {pipeline_mode = #tpu.pipeline_mode<synchronous>, transform_indices = @transform_1, window_bounds = array<i64: 16, 10>}, {pipeline_mode = #tpu.pipeline_mode<synchronous>, transform_indices = @transform_2, window_bounds = array<i64: 16, 1>}, {pipeline_mode = #tpu.pipeline_mode<synchronous>, transform_indices = @transform_3, window_bounds = array<i64: 64, 16>}, {pipeline_mode = #tpu.pipeline_mode<synchronous>, transform_indices = @transform_4, window_bounds = array<i64: 64, 1>}, {pipeline_mode = #tpu.pipeline_mode<synchronous>, transform_indices = @transform_5, window_bounds = array<i64: 3, 64>}, {pipeline_mode = #tpu.pipeline_mode<synchronous>, transform_indices = @transform_6, window_bounds = array<i64: 3, 1>}, {transform_indices = @transform_7, window_bounds = array<i64: 3, 512>}]} {
    %c0 = arith.constant 0 : index
    %c0_0 = arith.constant 0 : index
    %0 = vector.load %arg2[%c0, %c0_0] : memref<16x10xbf16, #tpu.memory_space<vmem>>, vector<16x10xbf16>
    %c0_1 = arith.constant 0 : index
    %c0_2 = arith.constant 0 : index
    %1 = vector.load %arg1[%c0_1, %c0_2] : memref<10x512xbf16, #tpu.memory_space<vmem>>, vector<10x512xbf16>
    %cst = arith.constant dense<0.000000e+00> : vector<16x512xf32>
    %2 = tpu.matmul %0, %1, %cst {dimension_numbers = #tpu.dot_dimension_numbers<[1], [0], [0], [1], [0, 0, 1, 1], [], []>} : vector<16x10xbf16>, vector<10x512xbf16>, vector<16x512xf32> -> vector<16x512xf32>
    %c0_3 = arith.constant 0 : index
    %c0_4 = arith.constant 0 : index
    %3 = vector.load %arg3[%c0_3, %c0_4] : memref<16x1xf32, #tpu.memory_space<vmem>>, vector<16x1xf32>
    %4 = vector.broadcast %3 : vector<16x1xf32> to vector<16x512xf32>
    %5 = arith.addf %2, %4 : vector<16x512xf32>
    %cst_5 = arith.constant 0.000000e+00 : f32
    %6 = vector.broadcast %cst_5 : f32 to vector<16x512xf32>
    %7 = arith.maximumf %5, %6 : vector<16x512xf32>
    %c0_6 = arith.constant 0 : index
    %c0_7 = arith.constant 0 : index
    %8 = vector.load %arg4[%c0_6, %c0_7] : memref<64x16xf32, #tpu.memory_space<vmem>>, vector<64x16xf32>
    %cst_8 = arith.constant dense<0.000000e+00> : vector<64x512xf32>
    %9 = tpu.matmul %8, %7, %cst_8 {dimension_numbers = #tpu.dot_dimension_numbers<[1], [0], [0], [1], [0, 0, 1, 1], [], []>} : vector<64x16xf32>, vector<16x512xf32>, vector<64x512xf32> -> vector<64x512xf32>
    %c0_9 = arith.constant 0 : index
    %c0_10 = arith.constant 0 : index
    %10 = vector.load %arg5[%c0_9, %c0_10] : memref<64x1xf32, #tpu.memory_space<vmem>>, vector<64x1xf32>
    %11 = vector.broadcast %10 : vector<64x1xf32> to vector<64x512xf32>
    %12 = arith.addf %9, %11 : vector<64x512xf32>
    %cst_11 = arith.constant 0.000000e+00 : f32
    %13 = vector.broadcast %cst_11 : f32 to vector<64x512xf32>
    %14 = arith.maximumf %12, %13 : vector<64x512xf32>
    %c0_12 = arith.constant 0 : index
    %c0_13 = arith.constant 0 : index
    %15 = vector.load %arg6[%c0_12, %c0_13] : memref<3x64xf32, #tpu.memory_space<vmem>>, vector<3x64xf32>
    %cst_14 = arith.constant dense<0.000000e+00> : vector<3x512xf32>
    %16 = tpu.matmul %15, %14, %cst_14 {dimension_numbers = #tpu.dot_dimension_numbers<[1], [0], [0], [1], [0, 0, 1, 1], [], []>} : vector<3x64xf32>, vector<64x512xf32>, vector<3x512xf32> -> vector<3x512xf32>
    %c0_15 = arith.constant 0 : index
    %c0_16 = arith.constant 0 : index
    %17 = vector.load %arg7[%c0_15, %c0_16] : memref<3x1xf32, #tpu.memory_space<vmem>>, vector<3x1xf32>
    %18 = vector.broadcast %17 : vector<3x1xf32> to vector<3x512xf32>
    %19 = arith.addf %16, %18 : vector<3x512xf32>
    %cst_17 = arith.constant dense<0xFF800000> : vector<512xf32>
    %20 = vector.multi_reduction <maximumf>, %19, %cst_17 [0] : vector<3x512xf32> to vector<512xf32>
    %21 = vector.shape_cast %20 : vector<512xf32> to vector<1x512xf32>
    %22 = vector.broadcast %21 : vector<1x512xf32> to vector<3x512xf32>
    %23 = arith.subf %19, %22 : vector<3x512xf32>
    %24 = math.exp %23 : vector<3x512xf32>
    %cst_18 = arith.constant dense<0.000000e+00> : vector<512xf32>
    %25 = vector.multi_reduction <add>, %24, %cst_18 [0] : vector<3x512xf32> to vector<512xf32>
    %26 = vector.shape_cast %25 : vector<512xf32> to vector<1x512xf32>
    %27 = vector.broadcast %26 : vector<1x512xf32> to vector<3x512xf32>
    %28 = arith.divf %24, %27 : vector<3x512xf32>
    %c0_19 = arith.constant 0 : index
    %c0_20 = arith.constant 0 : index
    %29 = vector.load %arg8[%c0_19, %c0_20] : memref<3x512xf32, #tpu.memory_space<vmem>>, vector<3x512xf32>
    tpu.vector_store %arg8[%c0_19, %c0_20], %28 {strides = array<i32>} : memref<3x512xf32, #tpu.memory_space<vmem>>, vector<3x512xf32>,
    return
  }
  func.func @transform_0(%arg0: i32) -> (i32, i32) {
    %c0_i32 = arith.constant 0 : i32
    %c0_i32_0 = arith.constant 0 : i32
    return %c0_i32, %arg0 : i32, i32
  }
  func.func @transform_1(%arg0: i32) -> (i32, i32) {
    %c0_i32 = arith.constant 0 : i32
    %c0_i32_0 = arith.constant 0 : i32
    %c0_i32_1 = arith.constant 0 : i32
    return %c0_i32, %c0_i32_0 : i32, i32
  }
  func.func @transform_2(%arg0: i32) -> (i32, i32) {
    %c0_i32 = arith.constant 0 : i32
    %c0_i32_0 = arith.constant 0 : i32
    %c0_i32_1 = arith.constant 0 : i32
    return %c0_i32, %c0_i32_0 : i32, i32
  }
  func.func @transform_3(%arg0: i32) -> (i32, i32) {
    %c0_i32 = arith.constant 0 : i32
    %c0_i32_0 = arith.constant 0 : i32
    %c0_i32_1 = arith.constant 0 : i32
    return %c0_i32, %c0_i32_0 : i32, i32
  }
  func.func @transform_4(%arg0: i32) -> (i32, i32) {
    %c0_i32 = arith.constant 0 : i32
    %c0_i32_0 = arith.constant 0 : i32
    %c0_i32_1 = arith.constant 0 : i32
    return %c0_i32, %c0_i32_0 : i32, i32
  }
  func.func @transform_5(%arg0: i32) -> (i32, i32) {
    %c0_i32 = arith.constant 0 : i32
    %c0_i32_0 = arith.constant 0 : i32
    %c0_i32_1 = arith.constant 0 : i32
    return %c0_i32, %c0_i32_0 : i32, i32
  }
  func.func @transform_6(%arg0: i32) -> (i32, i32) {
    %c0_i32 = arith.constant 0 : i32
    %c0_i32_0 = arith.constant 0 : i32
    %c0_i32_1 = arith.constant 0 : i32
    return %c0_i32, %c0_i32_0 : i32, i32
  }
  func.func @transform_7(%arg0: i32) -> (i32, i32) {
    %c0_i32 = arith.constant 0 : i32
    %c0_i32_0 = arith.constant 0 : i32
    return %c0_i32, %arg0 : i32, i32
  }
}

</mosaic_0001>

<llo_original>
// kernel: tpu_custom_call.1
$region0: #{tpu_custom_call.1}
  #allocation0 [shape = 'u32[]', space=smem, size = 0x4, offset = 0x4, fixed_abs, tag = 'smem constant byte address 0x4 - core index']
  #allocation1 [shape = 'u32[144,128]{1,0:T(1,128)}', space=vmem, size = 0x12000, scoped, tag = 'internal scratch']
  %s0 = inlined_call_operand.vmem [shape: bf16[10,1024], index: 0, kind: input, shape index: {}]
  %s1 = inlined_call_operand.vmem [shape: bf16[16,10], index: 1, kind: input, shape index: {}]
  %s2 = inlined_call_operand.vmem [shape: f32[16,1], index: 2, kind: input, shape index: {}]
  %s3 = inlined_call_operand.vmem [shape: f32[64,16], index: 3, kind: input, shape index: {}]
  %s4 = inlined_call_operand.vmem [shape: f32[64,1], index: 4, kind: input, shape index: {}]
  %s5 = inlined_call_operand.vmem [shape: f32[3,64], index: 5, kind: input, shape index: {}]
  %s6 = inlined_call_operand.vmem [shape: f32[3,1], index: 6, kind: input, shape index: {}]
  %s7 = inlined_call_operand.hbm [shape: f32[3,1024], index: 7, kind: output, shape index: {}]
  %s8 = sld [smem:[#allocation0]]
  $region84: #{tpu_custom_call.1} parent=0
    _
  %s10 = ssub.s32 1, %s8
  %s11 = scalar_select 0, %s10, %s8
  $region1: #{tpu_custom_call.1} parent=0
    #allocation2 [shape = 'u8[32768]{0}', space=vmem, size = 0x8000, scoped, tag = 'input window, operand 0']
    #allocation3 [shape = 'u8[16384]{0}', space=vmem, size = 0x4000, scoped, tag = 'output window, operand 0']
    #allocation4 [shape = 's32[2]{0}', space=sflag, size = 0x8, scoped, tag = 'scoped memory for tpu_custom_call.1']
    %12 = vsyncpa [#allocation4], 0
    %s13 = scalar_lea.sflag [#allocation4], 1
    %14 = vsyncpa %s13, 0
    loop: start=0, step=1, limit=4
    $region2: #{tpu_custom_call.1} parent=1 // loop_pre_header
      _
    $region3: #{tpu_custom_call.1} parent=1 // loop_header
      %s16 = sphi 0, %s20
      %p17 = scmp.ge.s32.totalorder %s16, 4
      %s26 = sphi 0, %s28
      %s29 = sphi 0, %s26
      %s30 = sphi 0, %s29
      %s46 = sphi 0, %s30
      %s50 = sphi 0, %s50
      %s52 = sphi 0, %s50
      %s53 = sphi 0, %s52
      %s67 = sphi 0, %s53
      %s71 = sphi 0, %s71
      %s73 = sphi 0, %s71
      %s74 = sphi 0, %s73
      %s88 = sphi 0, %s74
      %s92 = sphi 0, %s92
      %s94 = sphi 0, %s92
      %s95 = sphi 0, %s94
      %s109 = sphi 0, %s95
      %s113 = sphi 0, %s113
      %s115 = sphi 0, %s113
      %s116 = sphi 0, %s115
      %s130 = sphi 0, %s116
      %s134 = sphi 0, %s134
      %s136 = sphi 0, %s134
      %s137 = sphi 0, %s136
      %s151 = sphi 0, %s137
      %s155 = sphi 0, %s155
      %s157 = sphi 0, %s155
      %s158 = sphi 0, %s157
      %s172 = sphi 0, %s158
      %s178 = sphi 0, %s180
      %s181 = sphi 0, %s178
      %s182 = sphi 0, %s181
      %s198 = sphi 0, %s182
    $region4: #{tpu_custom_call.1} parent=1 // loop_header_branch
      %19 = sbr.rel (%p17) target = $region8
    $region5: #{tpu_custom_call.1} parent=1 // loop_body
      %s21 = ssub.s32 %s16, 1
      %s22 = ssub.s32 %s16, 2
      %s23 = sadd.s32 %s16, 1
      %s24 = ssub.s32 %s16, %s23
      %p25 = scmp.eq.s32.totalorder %s24, 0
      %s27 = sadd.s32 %s26, 1
      %s28 = scalar_select %p25, %s26, %s27
      %p31 = pneg %p25
      %p32 = scmp.eq.s32.totalorder %s16, 1
      %p33 = por %p31, %p32
      %p34 = scmp.ne.s32.totalorder %s26, %s29
      %p35 = scmp.eq.s32.totalorder %s16, 0
      %p36 = por %p34, %p35
      %p37 = scmp.ne.s32.totalorder %s26, %s29
      %p38 = scmp.eq.s32.totalorder %s21, 1
      %p39 = por %p37, %p38
      %p40 = scmp.ne.s32.totalorder %s29, %s30
      %p41 = scmp.eq.s32.totalorder %s21, 0
      %p42 = por %p40, %p41
      %p43 = scmp.ne.s32.totalorder %s29, %s30
      %p44 = scmp.eq.s32.totalorder %s22, 1
      %p45 = por %p43, %p44
      %p47 = scmp.ne.s32.totalorder %s30, %s46
      %p48 = scmp.eq.s32.totalorder %s22, 0
      %p49 = por %p47, %p48
      %s51 = sadd.s32 %s50, 1
      %p54 = scmp.eq.s32.totalorder %s16, 1
      %p55 = scmp.ne.s32.totalorder %s50, %s52
      %p56 = scmp.eq.s32.totalorder %s16, 0
      %p57 = por %p55, %p56
      %p58 = scmp.ne.s32.totalorder %s50, %s52
      %p59 = scmp.eq.s32.totalorder %s21, 1
      %p60 = por %p58, %p59
      %p61 = scmp.ne.s32.totalorder %s52, %s53
      %p62 = scmp.eq.s32.totalorder %s21, 0
      %p63 = por %p61, %p62
      %p64 = scmp.ne.s32.totalorder %s52, %s53
      %p65 = scmp.eq.s32.totalorder %s22, 1
      %p66 = por %p64, %p65
      %p68 = scmp.ne.s32.totalorder %s53, %s67
      %p69 = scmp.eq.s32.totalorder %s22, 0
      %p70 = por %p68, %p69
      %s72 = sadd.s32 %s71, 1
      %p75 = scmp.eq.s32.totalorder %s16, 1
      %p76 = scmp.ne.s32.totalorder %s71, %s73
      %p77 = scmp.eq.s32.totalorder %s16, 0
      %p78 = por %p76, %p77
      %p79 = scmp.ne.s32.totalorder %s71, %s73
      %p80 = scmp.eq.s32.totalorder %s21, 1
      %p81 = por %p79, %p80
      %p82 = scmp.ne.s32.totalorder %s73, %s74
      %p83 = scmp.eq.s32.totalorder %s21, 0
      %p84 = por %p82, %p83
      %p85 = scmp.ne.s32.totalorder %s73, %s74
      %p86 = scmp.eq.s32.totalorder %s22, 1
      %p87 = por %p85, %p86
      %p89 = scmp.ne.s32.totalorder %s74, %s88
      %p90 = scmp.eq.s32.totalorder %s22, 0
      %p91 = por %p89, %p90
      %s93 = sadd.s32 %s92, 1
      %p96 = scmp.eq.s32.totalorder %s16, 1
      %p97 = scmp.ne.s32.totalorder %s92, %s94
      %p98 = scmp.eq.s32.totalorder %s16, 0
      %p99 = por %p97, %p98
      %p100 = scmp.ne.s32.totalorder %s92, %s94
      %p101 = scmp.eq.s32.totalorder %s21, 1
      %p102 = por %p100, %p101
      %p103 = scmp.ne.s32.totalorder %s94, %s95
      %p104 = scmp.eq.s32.totalorder %s21, 0
      %p105 = por %p103, %p104
      %p106 = scmp.ne.s32.totalorder %s94, %s95
      %p107 = scmp.eq.s32.totalorder %s22, 1
      %p108 = por %p106, %p107
      %p110 = scmp.ne.s32.totalorder %s95, %s109
      %p111 = scmp.eq.s32.totalorder %s22, 0
      %p112 = por %p110, %p111
      %s114 = sadd.s32 %s113, 1
      %p117 = scmp.eq.s32.totalorder %s16, 1
      %p118 = scmp.ne.s32.totalorder %s113, %s115
      %p119 = scmp.eq.s32.totalorder %s16, 0
      %p120 = por %p118, %p119
      %p121 = scmp.ne.s32.totalorder %s113, %s115
      %p122 = scmp.eq.s32.totalorder %s21, 1
      %p123 = por %p121, %p122
      %p124 = scmp.ne.s32.totalorder %s115, %s116
      %p125 = scmp.eq.s32.totalorder %s21, 0
      %p126 = por %p124, %p125
      %p127 = scmp.ne.s32.totalorder %s115, %s116
      %p128 = scmp.eq.s32.totalorder %s22, 1
      %p129 = por %p127, %p128
      %p131 = scmp.ne.s32.totalorder %s116, %s130
      %p132 = scmp.eq.s32.totalorder %s22, 0
      %p133 = por %p131, %p132
      %s135 = sadd.s32 %s134, 1
      %p138 = scmp.eq.s32.totalorder %s16, 1
      %p139 = scmp.ne.s32.totalorder %s134, %s136
      %p140 = scmp.eq.s32.totalorder %s16, 0
      %p141 = por %p139, %p140
      %p142 = scmp.ne.s32.totalorder %s134, %s136
      %p143 = scmp.eq.s32.totalorder %s21, 1
      %p144 = por %p142, %p143
      %p145 = scmp.ne.s32.totalorder %s136, %s137
      %p146 = scmp.eq.s32.totalorder %s21, 0
      %p147 = por %p145, %p146
      %p148 = scmp.ne.s32.totalorder %s136, %s137
      %p149 = scmp.eq.s32.totalorder %s22, 1
      %p150 = por %p148, %p149
      %p152 = scmp.ne.s32.totalorder %s137, %s151
      %p153 = scmp.eq.s32.totalorder %s22, 0
      %p154 = por %p152, %p153
      %s156 = sadd.s32 %s155, 1
      %p159 = scmp.eq.s32.totalorder %s16, 1
      %p160 = scmp.ne.s32.totalorder %s155, %s157
      %p161 = scmp.eq.s32.totalorder %s16, 0
      %p162 = por %p160, %p161
      %p163 = scmp.ne.s32.totalorder %s155, %s157
      %p164 = scmp.eq.s32.totalorder %s21, 1
      %p165 = por %p163, %p164
      %p166 = scmp.ne.s32.totalorder %s157, %s158
      %p167 = scmp.eq.s32.totalorder %s21, 0
      %p168 = por %p166, %p167
      %p169 = scmp.ne.s32.totalorder %s157, %s158
      %p170 = scmp.eq.s32.totalorder %s22, 1
      %p171 = por %p169, %p170
      %p173 = scmp.ne.s32.totalorder %s158, %s172
      %p174 = scmp.eq.s32.totalorder %s22, 0
      %p175 = por %p173, %p174
      %s176 = ssub.s32 %s16, %s23
      %p177 = scmp.eq.s32.totalorder %s176, 0
      %s179 = sadd.s32 %s178, 1
      %s180 = scalar_select %p177, %s178, %s179
      %p183 = pneg %p177
      %p184 = scmp.eq.s32.totalorder %s16, 1
      %p185 = por %p183, %p184
      %p186 = scmp.ne.s32.totalorder %s178, %s181
      %p187 = scmp.eq.s32.totalorder %s16, 0
      %p188 = por %p186, %p187
      %p189 = scmp.ne.s32.totalorder %s178, %s181
      %p190 = scmp.eq.s32.totalorder %s21, 1
      %p191 = por %p189, %p190
      %p192 = scmp.ne.s32.totalorder %s181, %s182
      %p193 = scmp.eq.s32.totalorder %s21, 0
      %p194 = por %p192, %p193
      %p195 = scmp.ne.s32.totalorder %s181, %s182
      %p196 = scmp.eq.s32.totalorder %s22, 1
      %p197 = por %p195, %p196
      %p199 = scmp.ne.s32.totalorder %s182, %s198
      %p200 = scmp.eq.s32.totalorder %s22, 0
      %p201 = por %p199, %p200
      %p202 = scmp.le.s32.totalorder 1, %s16
      %p203 = scmp.lt.s32.totalorder %s16, 3
      %p204 = pnand %p202, %p203
      %p205 = pneg %p204
      // Predicated region
      $region9: #{tpu_custom_call.1} parent=5 // pred_check
        _
      $region10: #{tpu_custom_call.1} parent=5 // pred_check_branch
        %207 = sbr.rel (%p204) target = $region12
      $region11: #{tpu_custom_call.1} parent=5 // pred_region
        %s208 = ssub.s32 %s16, 1
        // Predicated region
        $region13: #{tpu_custom_call.1} parent=11 // pred_check
          %p209 = pneg %p63
        $region14: #{tpu_custom_call.1} parent=11 // pred_check_branch
          %211 = sbr.rel (%p209) target = $region16
        $region15: #{tpu_custom_call.1} parent=11 // pred_region
          _
        $region16: #{tpu_custom_call.1} parent=11 // pred_fallthru
          _
        // Predicated region
        $region17: #{tpu_custom_call.1} parent=11 // pred_check
          %p212 = pneg %p84
        $region18: #{tpu_custom_call.1} parent=11 // pred_check_branch
          %214 = sbr.rel (%p212) target = $region20
        $region19: #{tpu_custom_call.1} parent=11 // pred_region
          _
        $region20: #{tpu_custom_call.1} parent=11 // pred_fallthru
          _
        // Predicated region
        $region21: #{tpu_custom_call.1} parent=11 // pred_check
          %p215 = pneg %p105
        $region22: #{tpu_custom_call.1} parent=11 // pred_check_branch
          %217 = sbr.rel (%p215) target = $region24
        $region23: #{tpu_custom_call.1} parent=11 // pred_region
          _
        $region24: #{tpu_custom_call.1} parent=11 // pred_fallthru
          _
        // Predicated region
        $region25: #{tpu_custom_call.1} parent=11 // pred_check
          %p218 = pneg %p126
        $region26: #{tpu_custom_call.1} parent=11 // pred_check_branch
          %220 = sbr.rel (%p218) target = $region28
        $region27: #{tpu_custom_call.1} parent=11 // pred_region
          _
        $region28: #{tpu_custom_call.1} parent=11 // pred_fallthru
          _
        // Predicated region
        $region29: #{tpu_custom_call.1} parent=11 // pred_check
          %p221 = pneg %p147
        $region30: #{tpu_custom_call.1} parent=11 // pred_check_branch
          %223 = sbr.rel (%p221) target = $region32
        $region31: #{tpu_custom_call.1} parent=11 // pred_region
          _
        $region32: #{tpu_custom_call.1} parent=11 // pred_fallthru
          _
        // Predicated region
        $region33: #{tpu_custom_call.1} parent=11 // pred_check
          %p224 = pneg %p168
        $region34: #{tpu_custom_call.1} parent=11 // pred_check_branch
          %226 = sbr.rel (%p224) target = $region36
        $region35: #{tpu_custom_call.1} parent=11 // pred_region
          _
        $region36: #{tpu_custom_call.1} parent=11 // pred_fallthru
          _
      $region12: #{tpu_custom_call.1} parent=5 // pred_fallthru
        _
      %p227 = scmp.lt.s32.totalorder %s16, 2
      // Predicated region
      $region37: #{tpu_custom_call.1} parent=5 // pred_check
        %p228 = pneg %p227
      $region38: #{tpu_custom_call.1} parent=5 // pred_check_branch
        %230 = sbr.rel (%p228) target = $region40
      $region39: #{tpu_custom_call.1} parent=5 // pred_region
        // Predicated region
        $region41: #{tpu_custom_call.1} parent=39 // pred_check
          %p231 = pneg %p36
        $region42: #{tpu_custom_call.1} parent=39 // pred_check_branch
          %233 = sbr.rel (%p231) target = $region44
        $region43: #{tpu_custom_call.1} parent=39 // pred_region
          %s234 = sand.u32 %s26, 1
          %s235 = sand.u32 %s26, 1
          %s236 = smul.addr %s235, 32
          %s237 = scalar_lea.vmem [#allocation2], %s236
          %s238 = smul.u32 4, %s16
          %s239 = smul.addr %s238, 4
          %s240 = scalar_lea.vmem %s0, %s239
          // Predicated region
          $region45: #{tpu_custom_call.1} parent=43 // pred_check
            _
          $region46: #{tpu_custom_call.1} parent=43 // pred_check_branch
            %242 = sbr.rel (0) target = $region48
          $region47: #{tpu_custom_call.1} parent=43 // pred_region
            // Predicated region
            $region49: #{tpu_custom_call.1} parent=47 // pred_check
              _
            $region50: #{tpu_custom_call.1} parent=47 // pred_check_branch
              %244 = sbr.rel (0) target = $region52
            $region51: #{tpu_custom_call.1} parent=47 // pred_region
              loop: start=0, step=1, limit=1
              $region53: #{tpu_custom_call.1} parent=51 // loop_pre_header
                _
              $region54: #{tpu_custom_call.1} parent=51 // loop_header
                %s246 = sphi 0, %s250
                %p247 = scmp.ge.s32.totalorder %s246, 1
                %s251 = sphi %s240, %s240
                %s252 = sphi %s237, %s237
              $region55: #{tpu_custom_call.1} parent=51 // loop_header_branch
                %249 = sbr.rel (%p247) target = $region59
              $region56: #{tpu_custom_call.1} parent=51 // loop_body
                %v253 = vld [vmem:[%s251] sm:$0xff]
                %254 = vst [vmem:[%s252] sm:$0xff] %v253
                %v255 = vld [vmem:[%s251 + $0x8] sm:$0xff]
                %256 = vst [vmem:[%s252 + $0x8] sm:$0xff] %v255
                %v257 = vld [vmem:[%s251 + $0x20] sm:$0xff]
                %258 = vst [vmem:[%s252 + $0x10] sm:$0xff] %v257
                %v259 = vld [vmem:[%s251 + $0x28] sm:$0xff]
                %260 = vst [vmem:[%s252 + $0x18] sm:$0xff] %v259
              $region57: #{tpu_custom_call.1} parent=51 // loop_footer
                %s250 = sadd.s32 1, %s246
              $region58: #{tpu_custom_call.1} parent=51 // loop_footer_branch
                %245 = sbr.rel target = $region54
              $region59: #{tpu_custom_call.1} parent=51 // loop_exit
                _
            $region52: #{tpu_custom_call.1} parent=47 // pred_fallthru
              _
            // Predicated region
            $region60: #{tpu_custom_call.1} parent=47 // pred_check
              _
            $region61: #{tpu_custom_call.1} parent=47 // pred_check_branch
              %262 = sbr.rel target = $region63
            $region62: #{tpu_custom_call.1} parent=47 // pred_region
              _
            $region63: #{tpu_custom_call.1} parent=47 // pred_fallthru
              _
          $region48: #{tpu_custom_call.1} parent=43 // pred_fallthru
            _
          %263 = vnop
        $region44: #{tpu_custom_call.1} parent=39 // pred_fallthru
          _
      $region40: #{tpu_custom_call.1} parent=5 // pred_fallthru
        _
      %p264 = scmp.le.s32.totalorder 1, %s16
      %p265 = scmp.lt.s32.totalorder %s16, 3
      %p266 = pnand %p264, %p265
      %p267 = pneg %p266
      // Predicated region
      $region64: #{tpu_custom_call.1} parent=5 // pred_check
        _
      $region65: #{tpu_custom_call.1} parent=5 // pred_check_branch
        %269 = sbr.rel (%p266) target = $region67
      $region66: #{tpu_custom_call.1} parent=5 // pred_region
        %s270 = ssub.s32 %s16, 1
        %s271 = sand.u32 %s29, 1
        %s272 = sand.u32 %s29, 1
        %s273 = smul.addr %s272, 32
        %s274 = scalar_lea.vmem [#allocation2], %s273
        // Predicated region
        $region68: #{tpu_custom_call.1} parent=66 // pred_check
          %p275 = pneg %p42
        $region69: #{tpu_custom_call.1} parent=66 // pred_check_branch
          %277 = sbr.rel (%p275) target = $region71
        $region70: #{tpu_custom_call.1} parent=66 // pred_region
          _
        $region71: #{tpu_custom_call.1} parent=66 // pred_fallthru
          _
        %s278 = sand.u32 %s29, 1
        %s279 = sand.u32 %s29, 1
        %s280 = smul.addr %s279, 32
        %s281 = scalar_lea.vmem [#allocation2], %s280
        %p282 = pneg %p42
        %p283 = pneg %p39
        %p284 = pneg %p63
        %p285 = pneg %p60
        %p286 = pneg %p84
        %p287 = pneg %p81
        %p288 = pneg %p105
        %p289 = pneg %p102
        %p290 = pneg %p126
        %p291 = pneg %p123
        %p292 = pneg %p147
        %p293 = pneg %p144
        %p294 = pneg %p168
        %p295 = pneg %p165
        %p296 = pneg %p194
        %p297 = pneg %p191
        %s298 = sand.u32 %s181, 1
        %s299 = scalar_lea.sflag [#allocation4], %s298
        %s300 = sand.u32 %s181, 1
        %s301 = smul.addr %s300, 16
        %s302 = scalar_lea.vmem [#allocation3], %s301
        %s303 = smul.u32 4, %s21
        %s304 = smul.u32 4, %s21
        %v306 = vld [vmem:[%s1] sm:$0xf]
        %v307 = vld [vmem:[%s1 + $0x4] sm:$0xf]
        %v308 = vld [vmem:[%s274] sm:$0xff]
        %v309 = vld [vmem:[%s274 + $0x8] sm:$0xff]
        %v310 = vld [vmem:[%s274 + $0x10] sm:$0x11]
        %v311 = vld [vmem:[%s274 + $0x18] sm:$0x11]
        %v312 = vld [vmem:[%s2] sm:$0xff]
        %v313 = vld [vmem:[%s2 + $0x8] sm:$0xff]
        %315 = vset.pattern.permute.xlu0 0
        %316 = vperm.xlu0 %315, %v312
        %v317 = vpop.permute.xlu0 %316
        %320 = vset.pattern.permute.xlu0 0
        %321 = vperm.xlu0 %320, %v313
        %v322 = vpop.permute.xlu0 %321
        %v326 = vunpack.c.l.b16 %v306
        %v327 = vunpack.c.l.b16 %v307
        %v328 = vpack.c.b16 %v327, %v326
        %v333 = vunpack.c.l.b16 %v308
        %v334 = vunpack.c.h.b16 %v308
        %v335 = vunpack.c.l.b16 %v309
        %v336 = vunpack.c.h.b16 %v309
        %v337 = vunpack.c.l.b16 %v310
        %v338 = vunpack.c.h.b16 %v310
        %v339 = vunpack.c.l.b16 %v311
        %v340 = vunpack.c.h.b16 %v311
        %v341 = vpack.c.b16 %v337, %v333
        %v342 = vpack.c.b16 %v338, %v334
        %v343 = vpack.c.b16 %v339, %v335
        %v344 = vpack.c.b16 %v340, %v336
        %vm345 = vcmask 80896
        %v347 = vsel %vm345, %v328, 0
        %vm349 = vcmask 1044480
        %v351 = vsel %vm349, %v341, 0
        %v354 = vsel %vm349, %v342, 0
        %v357 = vsel %vm349, %v343, 0
        %v360 = vsel %vm349, %v344, 0
        %362 = vmatprep.subr.bf16.mxu0 %v354
        %363 = vmatpush1.bf16.msra.mxu0 %v351
        %364 = vmatprep.subr.bf16.mxu0 0
        %365 = vmatpush1.bf16.msra.mxu0 0
        %366 = vmatprep.subr.bf16.mxu0 0
        %367 = vmatpush1.bf16.msra.mxu0 0
        %368 = vmatprep.subr.bf16.mxu0 0
        %369 = vmatpush1.bf16.msra.mxu0 0
        %370 = vmatprep.subr.bf16.mxu0 0
        %371 = vmatpush1.bf16.msra.mxu0 0
        %372 = vmatprep.subr.bf16.mxu0 0
        %373 = vmatpush1.bf16.msra.mxu0 0
        %374 = vmatprep.subr.bf16.mxu0 0
        %375 = vmatpush1.bf16.msra.mxu0 0
        %376 = vmatprep.subr.bf16.mxu0 0
        %377 = vmatpush1.bf16.msra.mxu0 0
        %378 = vmatprep.subr.bf16.mxu0 0
        %379 = vmatpush1.bf16.msra.mxu0 0
        %380 = vmatprep.subr.bf16.mxu0 0
        %381 = vmatpush1.bf16.msra.mxu0 0
        %382 = vmatprep.subr.bf16.mxu0 0
        %383 = vmatpush1.bf16.msra.mxu0 0
        %384 = vmatprep.subr.bf16.mxu0 0
        %385 = vmatpush1.bf16.msra.mxu0 0
        %386 = vmatprep.subr.bf16.mxu0 0
        %387 = vmatpush1.bf16.msra.mxu0 0
        %388 = vmatprep.subr.bf16.mxu0 0
        %389 = vmatpush1.bf16.msra.mxu0 0
        %390 = vmatprep.subr.bf16.mxu0 0
        %391 = vmatpush1.bf16.msra.mxu0 0
        %392 = vmatprep.subr.bf16.mxu0 0
        %393 = vmatpush1.bf16.msra.mxu0 0
        %394 = vmatprep.mubr.bf16.mxu0 0
        %395 = vmatmul.mubr.bf16.gmra.mrb[0].mxu0 %v347
        %v396 = vpop.f32.mrb[0].mxu0
        %v397 = vadd.f32 %v317, %v396
        %v398 = vpop.f32.mrb[0].mxu0
        %v399 = vadd.f32 %v317, %v398
        %v400 = vpop.f32.mrb[0].mxu0
        %v401 = vadd.f32 %v322, %v400
        %v402 = vpop.f32.mrb[0].mxu0
        %v403 = vadd.f32 %v322, %v402
        %404 = vdwg.mxu0
        %405 = vmatprep.subr.bf16.mxu0 %v360
        %406 = vmatpush1.bf16.msra.mxu0 %v357
        %407 = vmatprep.subr.bf16.mxu0 0
        %408 = vmatpush1.bf16.msra.mxu0 0
        %409 = vmatprep.subr.bf16.mxu0 0
        %410 = vmatpush1.bf16.msra.mxu0 0
        %411 = vmatprep.subr.bf16.mxu0 0
        %412 = vmatpush1.bf16.msra.mxu0 0
        %413 = vmatprep.subr.bf16.mxu0 0
        %414 = vmatpush1.bf16.msra.mxu0 0
        %415 = vmatprep.subr.bf16.mxu0 0
        %416 = vmatpush1.bf16.msra.mxu0 0
        %417 = vmatprep.subr.bf16.mxu0 0
        %418 = vmatpush1.bf16.msra.mxu0 0
        %419 = vmatprep.subr.bf16.mxu0 0
        %420 = vmatpush1.bf16.msra.mxu0 0
        %421 = vmatprep.subr.bf16.mxu0 0
        %422 = vmatpush1.bf16.msra.mxu0 0
        %423 = vmatprep.subr.bf16.mxu0 0
        %424 = vmatpush1.bf16.msra.mxu0 0
        %425 = vmatprep.subr.bf16.mxu0 0
        %426 = vmatpush1.bf16.msra.mxu0 0
        %427 = vmatprep.subr.bf16.mxu0 0
        %428 = vmatpush1.bf16.msra.mxu0 0
        %429 = vmatprep.subr.bf16.mxu0 0
        %430 = vmatpush1.bf16.msra.mxu0 0
        %431 = vmatprep.subr.bf16.mxu0 0
        %432 = vmatpush1.bf16.msra.mxu0 0
        %433 = vmatprep.subr.bf16.mxu0 0
        %434 = vmatpush1.bf16.msra.mxu0 0
        %435 = vmatprep.subr.bf16.mxu0 0
        %436 = vmatpush1.bf16.msra.mxu0 0
        %437 = vmatprep.mubr.bf16.mxu0 0
        %438 = vmatmul.mubr.bf16.gmra.mrb[0].mxu0 %v347
        %v439 = vpop.f32.mrb[0].mxu0
        %v440 = vadd.f32 %v317, %v439
        %v441 = vpop.f32.mrb[0].mxu0
        %v442 = vadd.f32 %v317, %v441
        %v443 = vpop.f32.mrb[0].mxu0
        %v444 = vadd.f32 %v322, %v443
        %v445 = vpop.f32.mrb[0].mxu0
        %v446 = vadd.f32 %v322, %v445
        %447 = vdwg.mxu0
        %v448 = vmax.f32 %v397, 0.0
        %v449 = vmax.f32 %v399, 0.0
        %v450 = vmax.f32 %v440, 0.0
        %v451 = vmax.f32 %v442, 0.0
        %v452 = vmax.f32 %v401, 0.0
        %v453 = vmax.f32 %v403, 0.0
        %v454 = vmax.f32 %v444, 0.0
        %v455 = vmax.f32 %v446, 0.0
        %v456 = vld [vmem:[%s3] sm:$0xff]
        %v457 = vld [vmem:[%s3 + $0x8] sm:$0xff]
        %v458 = vld [vmem:[%s3 + $0x10] sm:$0xff]
        %v459 = vld [vmem:[%s3 + $0x18] sm:$0xff]
        %v460 = vld [vmem:[%s3 + $0x20] sm:$0xff]
        %v461 = vld [vmem:[%s3 + $0x28] sm:$0xff]
        %v462 = vld [vmem:[%s3 + $0x30] sm:$0xff]
        %v463 = vld [vmem:[%s3 + $0x38] sm:$0xff]
        %v464 = vld [vmem:[%s4] sm:$0xff]
        %v465 = vld [vmem:[%s4 + $0x8] sm:$0xff]
        %v466 = vld [vmem:[%s4 + $0x10] sm:$0xff]
        %v467 = vld [vmem:[%s4 + $0x18] sm:$0xff]
        %v468 = vld [vmem:[%s4 + $0x20] sm:$0xff]
        %v469 = vld [vmem:[%s4 + $0x28] sm:$0xff]
        %v470 = vld [vmem:[%s4 + $0x30] sm:$0xff]
        %v471 = vld [vmem:[%s4 + $0x38] sm:$0xff]
        %473 = vset.pattern.permute.xlu0 0
        %474 = vperm.xlu0 %473, %v464
        %v475 = vpop.permute.xlu0 %474
        %478 = vset.pattern.permute.xlu0 0
        %479 = vperm.xlu0 %478, %v465
        %v480 = vpop.permute.xlu0 %479
        %483 = vset.pattern.permute.xlu0 0
        %484 = vperm.xlu0 %483, %v466
        %v485 = vpop.permute.xlu0 %484
        %488 = vset.pattern.permute.xlu0 0
        %489 = vperm.xlu0 %488, %v467
        %v490 = vpop.permute.xlu0 %489
        %493 = vset.pattern.permute.xlu0 0
        %494 = vperm.xlu0 %493, %v468
        %v495 = vpop.permute.xlu0 %494
        %498 = vset.pattern.permute.xlu0 0
        %499 = vperm.xlu0 %498, %v469
        %v500 = vpop.permute.xlu0 %499
        %503 = vset.pattern.permute.xlu0 0
        %504 = vperm.xlu0 %503, %v470
        %v505 = vpop.permute.xlu0 %504
        %508 = vset.pattern.permute.xlu0 0
        %509 = vperm.xlu0 %508, %v471
        %v510 = vpop.permute.xlu0 %509
        %vm512 = vcmask 130048
        %v514 = vsel %vm512, %v456, 0
        %v517 = vsel %vm512, %v457, 0
        %v520 = vsel %vm512, %v458, 0
        %v523 = vsel %vm512, %v459, 0
        %v526 = vsel %vm512, %v460, 0
        %v529 = vsel %vm512, %v461, 0
        %v532 = vsel %vm512, %v462, 0
        %v535 = vsel %vm512, %v463, 0
        %537 = vmatprep.subr.mxu0 %v449
        %538 = vmatpush1.msra.mxu0 %v448
        %539 = vmatprep.subr.mxu0 %v453
        %540 = vmatpush1.msra.mxu0 %v452
        %541 = vmatprep.subr.mxu0 0.0
        %542 = vmatpush1.msra.mxu0 0.0
        %543 = vmatprep.subr.mxu0 0.0
        %544 = vmatpush1.msra.mxu0 0.0
        %545 = vmatprep.subr.mxu0 0.0
        %546 = vmatpush1.msra.mxu0 0.0
        %547 = vmatprep.subr.mxu0 0.0
        %548 = vmatpush1.msra.mxu0 0.0
        %549 = vmatprep.subr.mxu0 0.0
        %550 = vmatpush1.msra.mxu0 0.0
        %551 = vmatprep.subr.mxu0 0.0
        %552 = vmatpush1.msra.mxu0 0.0
        %553 = vmatprep.subr.mxu0 0.0
        %554 = vmatpush1.msra.mxu0 0.0
        %555 = vmatprep.subr.mxu0 0.0
        %556 = vmatpush1.msra.mxu0 0.0
        %557 = vmatprep.subr.mxu0 0.0
        %558 = vmatpush1.msra.mxu0 0.0
        %559 = vmatprep.subr.mxu0 0.0
        %560 = vmatpush1.msra.mxu0 0.0
        %561 = vmatprep.subr.mxu0 0.0
        %562 = vmatpush1.msra.mxu0 0.0
        %563 = vmatprep.subr.mxu0 0.0
        %564 = vmatpush1.msra.mxu0 0.0
        %565 = vmatprep.subr.mxu0 0.0
        %566 = vmatpush1.msra.mxu0 0.0
        %567 = vmatprep.subr.mxu0 0.0
        %568 = vmatpush1.msra.mxu0 0.0
        %569 = vmatprep.subr.mxu0 0.0
        %570 = vmatpush1.msra.mxu0 0.0
        %571 = vmatprep.subr.mxu0 0.0
        %572 = vmatpush1.msra.mxu0 0.0
        %573 = vmatprep.subr.mxu0 0.0
        %574 = vmatpush1.msra.mxu0 0.0
        %575 = vmatprep.subr.mxu0 0.0
        %576 = vmatpush1.msra.mxu0 0.0
        %577 = vmatprep.subr.mxu0 0.0
        %578 = vmatpush1.msra.mxu0 0.0
        %579 = vmatprep.subr.mxu0 0.0
        %580 = vmatpush1.msra.mxu0 0.0
        %581 = vmatprep.subr.mxu0 0.0
        %582 = vmatpush1.msra.mxu0 0.0
        %583 = vmatprep.subr.mxu0 0.0
        %584 = vmatpush1.msra.mxu0 0.0
        %585 = vmatprep.subr.mxu0 0.0
        %586 = vmatpush1.msra.mxu0 0.0
        %587 = vmatprep.subr.mxu0 0.0
        %588 = vmatpush1.msra.mxu0 0.0
        %589 = vmatprep.subr.mxu0 0.0
        %590 = vmatpush1.msra.mxu0 0.0
        %591 = vmatprep.subr.mxu0 0.0
        %592 = vmatpush1.msra.mxu0 0.0
        %593 = vmatprep.subr.mxu0 0.0
        %594 = vmatpush1.msra.mxu0 0.0
        %595 = vmatprep.subr.mxu0 0.0
        %596 = vmatpush1.msra.mxu0 0.0
        %597 = vmatprep.subr.mxu0 0.0
        %598 = vmatpush1.msra.mxu0 0.0
        %599 = vmatprep.subr.mxu0 0.0
        %600 = vmatpush1.msra.mxu0 0.0
        %601 = vmatprep.mubr.f32.mxu0 0.0
        %602 = vmatmul.mubr.f32.gmra.mrb[0].mxu0 %v514
        %v603 = vpop.f32.mrb[0].mxu0
        %v604 = vadd.f32 %v475, %v603
        %v605 = vpop.f32.mrb[0].mxu0
        %v606 = vadd.f32 %v475, %v605
        %607 = vmatprep.mubr.f32.mxu0 0.0
        %608 = vmatmul.mubr.f32.gmra.mrb[0].mxu0 %v517
        %v609 = vpop.f32.mrb[0].mxu0
        %v610 = vadd.f32 %v480, %v609
        %v611 = vpop.f32.mrb[0].mxu0
        %v612 = vadd.f32 %v480, %v611
        %613 = vmatprep.mubr.f32.mxu0 0.0
        %614 = vmatmul.mubr.f32.gmra.mrb[0].mxu0 %v520
        %v615 = vpop.f32.mrb[0].mxu0
        %v616 = vadd.f32 %v485, %v615
        %v617 = vpop.f32.mrb[0].mxu0
        %v618 = vadd.f32 %v485, %v617
        %619 = vmatprep.mubr.f32.mxu0 0.0
        %620 = vmatmul.mubr.f32.gmra.mrb[0].mxu0 %v523
        %v621 = vpop.f32.mrb[0].mxu0
        %v622 = vadd.f32 %v490, %v621
        %v623 = vpop.f32.mrb[0].mxu0
        %v624 = vadd.f32 %v490, %v623
        %625 = vmatprep.mubr.f32.mxu0 0.0
        %626 = vmatmul.mubr.f32.gmra.mrb[0].mxu0 %v526
        %v627 = vpop.f32.mrb[0].mxu0
        %v628 = vadd.f32 %v495, %v627
        %v629 = vpop.f32.mrb[0].mxu0
        %v630 = vadd.f32 %v495, %v629
        %631 = vmatprep.mubr.f32.mxu0 0.0
        %632 = vmatmul.mubr.f32.gmra.mrb[0].mxu0 %v529
        %v633 = vpop.f32.mrb[0].mxu0
        %v634 = vadd.f32 %v500, %v633
        %v635 = vpop.f32.mrb[0].mxu0
        %v636 = vadd.f32 %v500, %v635
        %637 = vmatprep.mubr.f32.mxu0 0.0
        %638 = vmatmul.mubr.f32.gmra.mrb[0].mxu0 %v532
        %v639 = vpop.f32.mrb[0].mxu0
        %v640 = vadd.f32 %v505, %v639
        %v641 = vpop.f32.mrb[0].mxu0
        %v642 = vadd.f32 %v505, %v641
        %643 = vmatprep.mubr.f32.mxu0 0.0
        %644 = vmatmul.mubr.f32.gmra.mrb[0].mxu0 %v535
        %v645 = vpop.f32.mrb[0].mxu0
        %v646 = vadd.f32 %v510, %v645
        %v647 = vpop.f32.mrb[0].mxu0
        %v648 = vadd.f32 %v510, %v647
        %649 = vdwg.mxu0
        %650 = vmatprep.subr.mxu0 %v451
        %651 = vmatpush1.msra.mxu0 %v450
        %652 = vmatprep.subr.mxu0 %v455
        %653 = vmatpush1.msra.mxu0 %v454
        %654 = vmatprep.subr.mxu0 0.0
        %655 = vmatpush1.msra.mxu0 0.0
        %656 = vmatprep.subr.mxu0 0.0
        %657 = vmatpush1.msra.mxu0 0.0
        %658 = vmatprep.subr.mxu0 0.0
        %659 = vmatpush1.msra.mxu0 0.0
        %660 = vmatprep.subr.mxu0 0.0
        %661 = vmatpush1.msra.mxu0 0.0
        %662 = vmatprep.subr.mxu0 0.0
        %663 = vmatpush1.msra.mxu0 0.0
        %664 = vmatprep.subr.mxu0 0.0
        %665 = vmatpush1.msra.mxu0 0.0
        %666 = vmatprep.subr.mxu0 0.0
        %667 = vmatpush1.msra.mxu0 0.0
        %668 = vmatprep.subr.mxu0 0.0
        %669 = vmatpush1.msra.mxu0 0.0
        %670 = vmatprep.subr.mxu0 0.0
        %671 = vmatpush1.msra.mxu0 0.0
        %672 = vmatprep.subr.mxu0 0.0
        %673 = vmatpush1.msra.mxu0 0.0
        %674 = vmatprep.subr.mxu0 0.0
        %675 = vmatpush1.msra.mxu0 0.0
        %676 = vmatprep.subr.mxu0 0.0
        %677 = vmatpush1.msra.mxu0 0.0
        %678 = vmatprep.subr.mxu0 0.0
        %679 = vmatpush1.msra.mxu0 0.0
        %680 = vmatprep.subr.mxu0 0.0
        %681 = vmatpush1.msra.mxu0 0.0
        %682 = vmatprep.subr.mxu0 0.0
        %683 = vmatpush1.msra.mxu0 0.0
        %684 = vmatprep.subr.mxu0 0.0
        %685 = vmatpush1.msra.mxu0 0.0
        %686 = vmatprep.subr.mxu0 0.0
        %687 = vmatpush1.msra.mxu0 0.0
        %688 = vmatprep.subr.mxu0 0.0
        %689 = vmatpush1.msra.mxu0 0.0
        %690 = vmatprep.subr.mxu0 0.0
        %691 = vmatpush1.msra.mxu0 0.0
        %692 = vmatprep.subr.mxu0 0.0
        %693 = vmatpush1.msra.mxu0 0.0
        %694 = vmatprep.subr.mxu0 0.0
        %695 = vmatpush1.msra.mxu0 0.0
        %696 = vmatprep.subr.mxu0 0.0
        %697 = vmatpush1.msra.mxu0 0.0
        %698 = vmatprep.subr.mxu0 0.0
        %699 = vmatpush1.msra.mxu0 0.0
        %700 = vmatprep.subr.mxu0 0.0
        %701 = vmatpush1.msra.mxu0 0.0
        %702 = vmatprep.subr.mxu0 0.0
        %703 = vmatpush1.msra.mxu0 0.0
        %704 = vmatprep.subr.mxu0 0.0
        %705 = vmatpush1.msra.mxu0 0.0
        %706 = vmatprep.subr.mxu0 0.0
        %707 = vmatpush1.msra.mxu0 0.0
        %708 = vmatprep.subr.mxu0 0.0
        %709 = vmatpush1.msra.mxu0 0.0
        %710 = vmatprep.subr.mxu0 0.0
        %711 = vmatpush1.msra.mxu0 0.0
        %712 = vmatprep.subr.mxu0 0.0
        %713 = vmatpush1.msra.mxu0 0.0
        %714 = vmatprep.mubr.f32.mxu0 0.0
        %715 = vmatmul.mubr.f32.gmra.mrb[0].mxu0 %v514
        %v716 = vpop.f32.mrb[0].mxu0
        %v717 = vadd.f32 %v475, %v716
        %v718 = vpop.f32.mrb[0].mxu0
        %v719 = vadd.f32 %v475, %v718
        %720 = vmatprep.mubr.f32.mxu0 0.0
        %721 = vmatmul.mubr.f32.gmra.mrb[0].mxu0 %v517
        %v722 = vpop.f32.mrb[0].mxu0
        %v723 = vadd.f32 %v480, %v722
        %v724 = vpop.f32.mrb[0].mxu0
        %v725 = vadd.f32 %v480, %v724
        %726 = vmatprep.mubr.f32.mxu0 0.0
        %727 = vmatmul.mubr.f32.gmra.mrb[0].mxu0 %v520
        %v728 = vpop.f32.mrb[0].mxu0
        %v729 = vadd.f32 %v485, %v728
        %v730 = vpop.f32.mrb[0].mxu0
        %v731 = vadd.f32 %v485, %v730
        %732 = vmatprep.mubr.f32.mxu0 0.0
        %733 = vmatmul.mubr.f32.gmra.mrb[0].mxu0 %v523
        %v734 = vpop.f32.mrb[0].mxu0
        %v735 = vadd.f32 %v490, %v734
        %v736 = vpop.f32.mrb[0].mxu0
        %v737 = vadd.f32 %v490, %v736
        %738 = vmatprep.mubr.f32.mxu0 0.0
        %739 = vmatmul.mubr.f32.gmra.mrb[0].mxu0 %v526
        %v740 = vpop.f32.mrb[0].mxu0
        %v741 = vadd.f32 %v495, %v740
        %v742 = vpop.f32.mrb[0].mxu0
        %v743 = vadd.f32 %v495, %v742
        %744 = vmatprep.mubr.f32.mxu0 0.0
        %745 = vmatmul.mubr.f32.gmra.mrb[0].mxu0 %v529
        %v746 = vpop.f32.mrb[0].mxu0
        %v747 = vadd.f32 %v500, %v746
        %v748 = vpop.f32.mrb[0].mxu0
        %v749 = vadd.f32 %v500, %v748
        %750 = vmatprep.mubr.f32.mxu0 0.0
        %751 = vmatmul.mubr.f32.gmra.mrb[0].mxu0 %v532
        %v752 = vpop.f32.mrb[0].mxu0
        %v753 = vadd.f32 %v505, %v752
        %v754 = vpop.f32.mrb[0].mxu0
        %v755 = vadd.f32 %v505, %v754
        %756 = vmatprep.mubr.f32.mxu0 0.0
        %757 = vmatmul.mubr.f32.gmra.mrb[0].mxu0 %v535
        %v758 = vpop.f32.mrb[0].mxu0
        %v759 = vadd.f32 %v510, %v758
        %v760 = vpop.f32.mrb[0].mxu0
        %v761 = vadd.f32 %v510, %v760
        %762 = vdwg.mxu0
        %v763 = vmax.f32 %v604, 0.0
        %v764 = vmax.f32 %v606, 0.0
        %v765 = vmax.f32 %v717, 0.0
        %v766 = vmax.f32 %v719, 0.0
        %v767 = vmax.f32 %v610, 0.0
        %v768 = vmax.f32 %v612, 0.0
        %v769 = vmax.f32 %v723, 0.0
        %v770 = vmax.f32 %v725, 0.0
        %v771 = vmax.f32 %v616, 0.0
        %v772 = vmax.f32 %v618, 0.0
        %v773 = vmax.f32 %v729, 0.0
        %v774 = vmax.f32 %v731, 0.0
        %v775 = vmax.f32 %v622, 0.0
        %v776 = vmax.f32 %v624, 0.0
        %v777 = vmax.f32 %v735, 0.0
        %v778 = vmax.f32 %v737, 0.0
        %v779 = vmax.f32 %v628, 0.0
        %v780 = vmax.f32 %v630, 0.0
        %v781 = vmax.f32 %v741, 0.0
        %v782 = vmax.f32 %v743, 0.0
        %v783 = vmax.f32 %v634, 0.0
        %v784 = vmax.f32 %v636, 0.0
        %v785 = vmax.f32 %v747, 0.0
        %v786 = vmax.f32 %v749, 0.0
        %v787 = vmax.f32 %v640, 0.0
        %v788 = vmax.f32 %v642, 0.0
        %v789 = vmax.f32 %v753, 0.0
        %v790 = vmax.f32 %v755, 0.0
        %v791 = vmax.f32 %v646, 0.0
        %v792 = vmax.f32 %v648, 0.0
        %v793 = vmax.f32 %v759, 0.0
        %v794 = vmax.f32 %v761, 0.0
        %v795 = vld [vmem:[%s5] sm:$0x7]
        %v796 = vld [vmem:[%s6] sm:$0x7]
        %798 = vset.pattern.permute.xlu0 0
        %799 = vperm.xlu0 %798, %v796
        %v800 = vpop.permute.xlu0 %799
        %vm802 = vcmask 523264
        %v804 = vsel %vm802, %v795, 0
        %806 = vmatprep.subr.mxu0 %v764
        %807 = vmatpush1.msra.mxu0 %v763
        %808 = vmatprep.subr.mxu0 %v768
        %809 = vmatpush1.msra.mxu0 %v767
        %810 = vmatprep.subr.mxu0 %v772
        %811 = vmatpush1.msra.mxu0 %v771
        %812 = vmatprep.subr.mxu0 %v776
        %813 = vmatpush1.msra.mxu0 %v775
        %814 = vmatprep.subr.mxu0 %v780
        %815 = vmatpush1.msra.mxu0 %v779
        %816 = vmatprep.subr.mxu0 %v784
        %817 = vmatpush1.msra.mxu0 %v783
        %818 = vmatprep.subr.mxu0 %v788
        %819 = vmatpush1.msra.mxu0 %v787
        %820 = vmatprep.subr.mxu0 %v792
        %821 = vmatpush1.msra.mxu0 %v791
        %822 = vmatprep.subr.mxu0 0.0
        %823 = vmatpush1.msra.mxu0 0.0
        %824 = vmatprep.subr.mxu0 0.0
        %825 = vmatpush1.msra.mxu0 0.0
        %826 = vmatprep.subr.mxu0 0.0
        %827 = vmatpush1.msra.mxu0 0.0
        %828 = vmatprep.subr.mxu0 0.0
        %829 = vmatpush1.msra.mxu0 0.0
        %830 = vmatprep.subr.mxu0 0.0
        %831 = vmatpush1.msra.mxu0 0.0
        %832 = vmatprep.subr.mxu0 0.0
        %833 = vmatpush1.msra.mxu0 0.0
        %834 = vmatprep.subr.mxu0 0.0
        %835 = vmatpush1.msra.mxu0 0.0
        %836 = vmatprep.subr.mxu0 0.0
        %837 = vmatpush1.msra.mxu0 0.0
        %838 = vmatprep.subr.mxu0 0.0
        %839 = vmatpush1.msra.mxu0 0.0
        %840 = vmatprep.subr.mxu0 0.0
        %841 = vmatpush1.msra.mxu0 0.0
        %842 = vmatprep.subr.mxu0 0.0
        %843 = vmatpush1.msra.mxu0 0.0
        %844 = vmatprep.subr.mxu0 0.0
        %845 = vmatpush1.msra.mxu0 0.0
        %846 = vmatprep.subr.mxu0 0.0
        %847 = vmatpush1.msra.mxu0 0.0
        %848 = vmatprep.subr.mxu0 0.0
        %849 = vmatpush1.msra.mxu0 0.0
        %850 = vmatprep.subr.mxu0 0.0
        %851 = vmatpush1.msra.mxu0 0.0
        %852 = vmatprep.subr.mxu0 0.0
        %853 = vmatpush1.msra.mxu0 0.0
        %854 = vmatprep.subr.mxu0 0.0
        %855 = vmatpush1.msra.mxu0 0.0
        %856 = vmatprep.subr.mxu0 0.0
        %857 = vmatpush1.msra.mxu0 0.0
        %858 = vmatprep.subr.mxu0 0.0
        %859 = vmatpush1.msra.mxu0 0.0
        %860 = vmatprep.subr.mxu0 0.0
        %861 = vmatpush1.msra.mxu0 0.0
        %862 = vmatprep.subr.mxu0 0.0
        %863 = vmatpush1.msra.mxu0 0.0
        %864 = vmatprep.subr.mxu0 0.0
        %865 = vmatpush1.msra.mxu0 0.0
        %866 = vmatprep.subr.mxu0 0.0
        %867 = vmatpush1.msra.mxu0 0.0
        %868 = vmatprep.subr.mxu0 0.0
        %869 = vmatpush1.msra.mxu0 0.0
        %870 = vmatprep.mubr.f32.mxu0 0.0
        %871 = vmatmul.mubr.f32.gmra.mrb[0].mxu0 %v804
        %v872 = vpop.f32.mrb[0].mxu0
        %v873 = vadd.f32 %v800, %v872
        %v874 = vpop.f32.mrb[0].mxu0
        %v875 = vadd.f32 %v800, %v874
        %876 = vdwg.mxu0
        %877 = vmatprep.subr.mxu0 %v766
        %878 = vmatpush1.msra.mxu0 %v765
        %879 = vmatprep.subr.mxu0 %v770
        %880 = vmatpush1.msra.mxu0 %v769
        %881 = vmatprep.subr.mxu0 %v774
        %882 = vmatpush1.msra.mxu0 %v773
        %883 = vmatprep.subr.mxu0 %v778
        %884 = vmatpush1.msra.mxu0 %v777
        %885 = vmatprep.subr.mxu0 %v782
        %886 = vmatpush1.msra.mxu0 %v781
        %887 = vmatprep.subr.mxu0 %v786
        %888 = vmatpush1.msra.mxu0 %v785
        %889 = vmatprep.subr.mxu0 %v790
        %890 = vmatpush1.msra.mxu0 %v789
        %891 = vmatprep.subr.mxu0 %v794
        %892 = vmatpush1.msra.mxu0 %v793
        %893 = vmatprep.subr.mxu0 0.0
        %894 = vmatpush1.msra.mxu0 0.0
        %895 = vmatprep.subr.mxu0 0.0
        %896 = vmatpush1.msra.mxu0 0.0
        %897 = vmatprep.subr.mxu0 0.0
        %898 = vmatpush1.msra.mxu0 0.0
        %899 = vmatprep.subr.mxu0 0.0
        %900 = vmatpush1.msra.mxu0 0.0
        %901 = vmatprep.subr.mxu0 0.0
        %902 = vmatpush1.msra.mxu0 0.0
        %903 = vmatprep.subr.mxu0 0.0
        %904 = vmatpush1.msra.mxu0 0.0
        %905 = vmatprep.subr.mxu0 0.0
        %906 = vmatpush1.msra.mxu0 0.0
        %907 = vmatprep.subr.mxu0 0.0
        %908 = vmatpush1.msra.mxu0 0.0
        %909 = vmatprep.subr.mxu0 0.0
        %910 = vmatpush1.msra.mxu0 0.0
        %911 = vmatprep.subr.mxu0 0.0
        %912 = vmatpush1.msra.mxu0 0.0
        %913 = vmatprep.subr.mxu0 0.0
        %914 = vmatpush1.msra.mxu0 0.0
        %915 = vmatprep.subr.mxu0 0.0
        %916 = vmatpush1.msra.mxu0 0.0
        %917 = vmatprep.subr.mxu0 0.0
        %918 = vmatpush1.msra.mxu0 0.0
        %919 = vmatprep.subr.mxu0 0.0
        %920 = vmatpush1.msra.mxu0 0.0
        %921 = vmatprep.subr.mxu0 0.0
        %922 = vmatpush1.msra.mxu0 0.0
        %923 = vmatprep.subr.mxu0 0.0
        %924 = vmatpush1.msra.mxu0 0.0
        %925 = vmatprep.subr.mxu0 0.0
        %926 = vmatpush1.msra.mxu0 0.0
        %927 = vmatprep.subr.mxu0 0.0
        %928 = vmatpush1.msra.mxu0 0.0
        %929 = vmatprep.subr.mxu0 0.0
        %930 = vmatpush1.msra.mxu0 0.0
        %931 = vmatprep.subr.mxu0 0.0
        %932 = vmatpush1.msra.mxu0 0.0
        %933 = vmatprep.subr.mxu0 0.0
        %934 = vmatpush1.msra.mxu0 0.0
        %935 = vmatprep.subr.mxu0 0.0
        %936 = vmatpush1.msra.mxu0 0.0
        %937 = vmatprep.subr.mxu0 0.0
        %938 = vmatpush1.msra.mxu0 0.0
        %939 = vmatprep.subr.mxu0 0.0
        %940 = vmatpush1.msra.mxu0 0.0
        %941 = vmatprep.mubr.f32.mxu0 0.0
        %942 = vmatmul.mubr.f32.gmra.mrb[0].mxu0 %v804
        %v943 = vpop.f32.mrb[0].mxu0
        %v944 = vadd.f32 %v800, %v943
        %v945 = vpop.f32.mrb[0].mxu0
        %v946 = vadd.f32 %v800, %v945
        %947 = vdwg.mxu0
        %vm948 = vcmask 1042432
        %v949 = vsel %vm948, %v873, -inf
        %v950 = vrot.slane %v949, 4
        %v951 = vmax.f32 %v949, %v950
        %v952 = vrot.slane %v951, 2
        %v953 = vmax.f32 %v951, %v952
        %v954 = vrot.slane %v953, 1
        %v955 = vmax.f32 %v953, %v954
        %v956 = vsel %vm948, %v875, -inf
        %v957 = vrot.slane %v956, 4
        %v958 = vmax.f32 %v956, %v957
        %v959 = vrot.slane %v958, 2
        %v960 = vmax.f32 %v958, %v959
        %v961 = vrot.slane %v960, 1
        %v962 = vmax.f32 %v960, %v961
        %v963 = vsel %vm948, %v944, -inf
        %v964 = vrot.slane %v963, 4
        %v965 = vmax.f32 %v963, %v964
        %v966 = vrot.slane %v965, 2
        %v967 = vmax.f32 %v965, %v966
        %v968 = vrot.slane %v967, 1
        %v969 = vmax.f32 %v967, %v968
        %v970 = vsel %vm948, %v946, -inf
        %v971 = vrot.slane %v970, 4
        %v972 = vmax.f32 %v970, %v971
        %v973 = vrot.slane %v972, 2
        %v974 = vmax.f32 %v972, %v973
        %v975 = vrot.slane %v974, 1
        %v976 = vmax.f32 %v974, %v975
        %v977 = vsub.f32 %v873, %v955
        %v978 = vsub.f32 %v875, %v962
        %v979 = vsub.f32 %v944, %v969
        %v980 = vsub.f32 %v946, %v976
        %v981 = vmul.f32 %v977, 1.442695
        %v982 = vpow.pop %v981
        %v983 = vmul.f32 %v978, 1.442695
        %v984 = vpow.pop %v983
        %v985 = vmul.f32 %v979, 1.442695
        %v986 = vpow.pop %v985
        %v987 = vmul.f32 %v980, 1.442695
        %v988 = vpow.pop %v987
        %v989 = vsel %vm948, %v982, 0.0
        %v990 = vrot.slane %v989, 4
        %v991 = vadd.f32 %v989, %v990
        %v992 = vrot.slane %v991, 2
        %v993 = vadd.f32 %v991, %v992
        %v994 = vrot.slane %v993, 1
        %v995 = vadd.f32 %v993, %v994
        %v996 = vsel %vm948, %v984, 0.0
        %v997 = vrot.slane %v996, 4
        %v998 = vadd.f32 %v996, %v997
        %v999 = vrot.slane %v998, 2
        %v1000 = vadd.f32 %v998, %v999
        %v1001 = vrot.slane %v1000, 1
        %v1002 = vadd.f32 %v1000, %v1001
        %v1003 = vsel %vm948, %v986, 0.0
        %v1004 = vrot.slane %v1003, 4
        %v1005 = vadd.f32 %v1003, %v1004
        %v1006 = vrot.slane %v1005, 2
        %v1007 = vadd.f32 %v1005, %v1006
        %v1008 = vrot.slane %v1007, 1
        %v1009 = vadd.f32 %v1007, %v1008
        %v1010 = vsel %vm948, %v988, 0.0
        %v1011 = vrot.slane %v1010, 4
        %v1012 = vadd.f32 %v1010, %v1011
        %v1013 = vrot.slane %v1012, 2
        %v1014 = vadd.f32 %v1012, %v1013
        %v1015 = vrot.slane %v1014, 1
        %v1016 = vadd.f32 %v1014, %v1015
        %v1017 = vrcp.pop %v995
        %v1018 = vmul.f32 %v982, %v1017
        %v1019 = vrcp.pop %v1002
        %v1020 = vmul.f32 %v984, %v1019
        %v1021 = vrcp.pop %v1009
        %v1022 = vmul.f32 %v986, %v1021
        %v1023 = vrcp.pop %v1016
        %v1024 = vmul.f32 %v988, %v1023
        %v1029 = vcombine.low %v1018, %v1020
        %v1030 = vcombine.low %v1022, %v1024
        %1033 = vst [vmem:[%s302] sm:$0x77] %v1029
        %1034 = vst [vmem:[%s302 + $0x8] sm:$0x77] %v1030
        %s1035 = sand.u32 %s181, 1
        %s1036 = scalar_lea.sflag [#allocation4], %s1035
        %s1037 = sand.u32 %s181, 1
        %s1038 = smul.addr %s1037, 16
        %s1039 = scalar_lea.vmem [#allocation3], %s1038
        // Predicated region
        $region72: #{tpu_custom_call.1} parent=66 // pred_check
          %p1040 = pneg %p191
        $region73: #{tpu_custom_call.1} parent=66 // pred_check_branch
          %1042 = sbr.rel (%p1040) target = $region75
        $region74: #{tpu_custom_call.1} parent=66 // pred_region
          %s1043 = smul.u32 4, %s21
          %s1045 = ssub.s32 256, 256
          %1046 = vsyncadd %s1036, %s1045
          %s1047 = smul.addr %s1043, 64
          %s1048 = scalar_lea.hbm %s7, %s1047
          %s1050 = sshll.u32 %s1039, 4
          %s1051 = int_to_ptr.vmem [resolvable:$true] %s1050
          %1053 = dma.vmem_to_hbm [thread:$0]  %s1051, 256, %s1048, %s1036
        $region75: #{tpu_custom_call.1} parent=66 // pred_fallthru
          _
      $region67: #{tpu_custom_call.1} parent=5 // pred_fallthru
        _
      %p1054 = scmp.le.s32.totalorder 2, %s16
      // Predicated region
      $region76: #{tpu_custom_call.1} parent=5 // pred_check
        %p1055 = pneg %p1054
      $region77: #{tpu_custom_call.1} parent=5 // pred_check_branch
        %1057 = sbr.rel (%p1055) target = $region79
      $region78: #{tpu_custom_call.1} parent=5 // pred_region
        %s1058 = ssub.s32 %s16, 2
        // Predicated region
        $region80: #{tpu_custom_call.1} parent=78 // pred_check
          %p1059 = pneg %p197
        $region81: #{tpu_custom_call.1} parent=78 // pred_check_branch
          %1061 = sbr.rel (%p1059) target = $region83
        $region82: #{tpu_custom_call.1} parent=78 // pred_region
          %s1062 = sand.u32 %s182, 1
          %s1063 = scalar_lea.sflag [#allocation4], %s1062
          %s1064 = sand.u32 %s182, 1
          %s1065 = smul.addr %s1064, 16
          %s1066 = scalar_lea.vmem [#allocation3], %s1065
          %1067 = dma.done %s1063, 256
        $region83: #{tpu_custom_call.1} parent=78 // pred_fallthru
          _
      $region79: #{tpu_custom_call.1} parent=5 // pred_fallthru
        _
    $region6: #{tpu_custom_call.1} parent=1 // loop_footer
      %s20 = sadd.s32 1, %s16
    $region7: #{tpu_custom_call.1} parent=1 // loop_footer_branch
      %15 = sbr.rel target = $region3
    $region8: #{tpu_custom_call.1} parent=1 // loop_exit
      _
    %1068 = vsyncpa [#allocation4], 1
    %s1069 = scalar_lea.sflag [#allocation4], 1
    %1070 = vsyncpa %s1069, 1

</llo_original>
